<compile_context>
chip_gen: v6e
topology: v6e:2x2x1
jax: 0.10.0
libtpu: 0.0.40
codegen_flags: <defaults>
</compile_context>

<pallas_src>
import jax
import jax.numpy as jnp
from jax import lax
from jax.experimental import pallas as pl
from jax.experimental.pallas import tpu as pltpu


def _round_up(x: int, m: int) -> int:
    return ((x + m - 1) // m) * m


def _tpu_tiling_params():
    """Generation-aware (tb_max, target_steps, vmem_limit_bytes)."""
    try:
        info = pltpu.get_tpu_info()
        vmem_bytes = int(getattr(info, "vmem_capacity_bytes", 0))
    except Exception:
        vmem_bytes = 0
    if vmem_bytes >= 100 * 1024 * 1024:
        # v5e / v6e: 128 MiB VMEM per TC, single TensorCore.
        return 4096, 2, 96 * 1024 * 1024
    # v7x (64 MiB VMEM, 2 TCs) or unknown generation: conservative & correct.
    return 2048, 4, 48 * 1024 * 1024


def linear_kernel(x_ref, w_ref, b_ref, o_ref):
    """o = x @ w^T + b for one batch tile.

    x_ref: [TB, F] float32 in VMEM
    w_ref: [C, F]  float32 in VMEM (PyTorch nn.Linear weight layout, lane-dense)
    b_ref: [1, C]  float32 in VMEM
    o_ref: [TB, C] float32 in VMEM
    """
    acc = lax.dot_general(
        x_ref[...],
        w_ref[...],
        dimension_numbers=(((1,), (1,)), ((), ())),  # contract over F on both
        preferred_element_type=jnp.float32,
    )
    o_ref[...] = (acc + b_ref[...]).astype(o_ref.dtype)


def affectnet_binary_classifier_forward(x, w, b):
    """Forward pass of AffectNetBinaryClassifier (inference mode).

    x: [B, C, H, W] or [B, F] float32
    w: [num_classes, feature_dim] float32 (PyTorch nn.Linear weight layout)
    b: [num_classes] float32
    returns: [B, num_classes] float32
    """
    # Backbone = Identity; flatten if >2 dims (torch.flatten(x, 1) == reshape,
    # metadata only, no extra HBM round-trip).
    if x.ndim > 2:
        x = x.reshape(x.shape[0], -1)

    batch, feature_dim = x.shape
    num_classes, w_feat = w.shape
    assert w_feat == feature_dim, (w_feat, feature_dim)

    tb_max, target_steps, vmem_limit = _tpu_tiling_params()

    # Batch tile: multiple of 8 (sublane), capped by the generation's tb_max,
    # and small enough that large batches give >= target_steps grid steps
    # (megacore sharding on v7x, pipeline overlap everywhere).
    # No padding of x: the grid is ceil-divided and the last block is ragged.
    tb = max(8, min(tb_max, _round_up(pl.cdiv(batch, target_steps), 8)))
    grid = (pl.cdiv(batch, tb),)

    b2d = b.reshape(1, num_classes)

    out = pl.pallas_call(
        linear_kernel,
        out_shape=jax.ShapeDtypeStruct((batch, num_classes), jnp.float32),
        grid_spec=pltpu.PrefetchScalarGridSpec(
            num_scalar_prefetch=0,
            grid=grid,
            in_specs=[
                # x: tiled along batch, full feature extent (double-buffered
                # by the BlockSpec pipeline; the x DMA is the bottleneck).
                pl.BlockSpec((tb, feature_dim), lambda i: (i, 0)),
                # w: full array, constant block index -> VMEM-resident.
                pl.BlockSpec((num_classes, feature_dim), lambda i: (0, 0)),
                # b: full array, constant block index -> VMEM-resident.
                pl.BlockSpec((1, num_classes), lambda i: (0, 0)),
            ],
            out_specs=pl.BlockSpec((tb, num_classes), lambda i: (i, 0)),
        ),
        compiler_params=pltpu.CompilerParams(
            dimension_semantics=("parallel",),   # megacore sharding on v7x
            vmem_limit_bytes=vmem_limit,         # generation-aware headroom
        ),
    )(x, w, b2d)

    return out


if __name__ == "__main__":
    # Small deterministic example consistent with the module defaults:
    # feature_dim = 1408 = 22 * 8 * 8, num_classes = 2, batch = 2.
    batch, C, H, W = 2, 22, 8, 8
    feature_dim = C * H * W            # 1408, module default
    num_classes = 2

    key = jax.random.PRNGKey(0)
    kx, kw, kb = jax.random.split(key, 3)

    x = jax.random.normal(kx, (batch, C, H, W), dtype=jnp.float32)
    # Deterministic parameter init (PyTorch-Linear-like uniform bound).
    bound = 1.0 / (feature_dim ** 0.5)
    w = jax.random.uniform(kw, (num_classes, feature_dim),
                           minval=-bound, maxval=bound, dtype=jnp.float32)
    b = jax.random.uniform(kb, (num_classes,),
                           minval=-bound, maxval=bound, dtype=jnp.float32)

    out = affectnet_binary_classifier_forward(x, w, b)
    out = jax.block_until_ready(out)

    # Sanity check against plain-JAX reference (same default matmul precision).
    ref = x.reshape(batch, -1) @ w.T + b
    assert out.shape == (batch, num_classes), out.shape
    assert jnp.allclose(out, ref, atol=1e-4, rtol=1e-4)

    print("KERNEL_OK")
</pallas_src>

<mosaic_0001>
module attributes {stable_mosaic.version = 11 : i64} {
  func.func @linear_kernel(%arg0: i32, %arg1: memref<8x1408xf32, #tpu.memory_space<vmem>>, %arg2: memref<2x1408xf32, #tpu.memory_space<vmem>>, %arg3: memref<1x2xf32, #tpu.memory_space<vmem>>, %arg4: memref<8x2xf32, #tpu.memory_space<vmem>>) attributes {dimension_semantics = [#tpu.dimension_semantics<parallel>], iteration_bounds = array<i64: 1>, scalar_prefetch = 0 : i64, scratch_operands = 0 : i64, tpu.core_type = #tpu.core_type<tc>, window_params = [{transform_indices = @transform_0, window_bounds = array<i64: 8, 1408>}, {pipeline_mode = #tpu.pipeline_mode<synchronous>, transform_indices = @transform_1, window_bounds = array<i64: 2, 1408>}, {pipeline_mode = #tpu.pipeline_mode<synchronous>, transform_indices = @transform_2, window_bounds = array<i64: 1, 2>}, {transform_indices = @transform_3, window_bounds = array<i64: 8, 2>}]} {
    %c0 = arith.constant 0 : index
    %c0_0 = arith.constant 0 : index
    %0 = vector.load %arg1[%c0, %c0_0] : memref<8x1408xf32, #tpu.memory_space<vmem>>, vector<8x1408xf32>
    %c0_1 = arith.constant 0 : index
    %c0_2 = arith.constant 0 : index
    %1 = vector.load %arg2[%c0_1, %c0_2] : memref<2x1408xf32, #tpu.memory_space<vmem>>, vector<2x1408xf32>
    %cst = arith.constant dense<0.000000e+00> : vector<8x2xf32>
    %2 = tpu.matmul %0, %1, %cst {dimension_numbers = #tpu.dot_dimension_numbers<[1], [1], [0], [0], [0, 0, 1, 0], [], []>} : vector<8x1408xf32>, vector<2x1408xf32>, vector<8x2xf32> -> vector<8x2xf32>
    %c0_3 = arith.constant 0 : index
    %c0_4 = arith.constant 0 : index
    %3 = vector.load %arg3[%c0_3, %c0_4] : memref<1x2xf32, #tpu.memory_space<vmem>>, vector<1x2xf32>
    %4 = vector.broadcast %3 : vector<1x2xf32> to vector<8x2xf32>
    %5 = arith.addf %2, %4 : vector<8x2xf32>
    %c0_5 = arith.constant 0 : index
    %c0_6 = arith.constant 0 : index
    %6 = vector.load %arg4[%c0_5, %c0_6] : memref<8x2xf32, #tpu.memory_space<vmem>>, vector<8x2xf32>
    tpu.vector_store %arg4[%c0_5, %c0_6], %5 {strides = array<i32>} : memref<8x2xf32, #tpu.memory_space<vmem>>, vector<8x2xf32>,
    return
  }
  func.func @transform_0(%arg0: i32) -> (i32, i32) {
    %c0_i32 = arith.constant 0 : i32
    %c0_i32_0 = arith.constant 0 : i32
    return %arg0, %c0_i32 : i32, i32
  }
  func.func @transform_1(%arg0: i32) -> (i32, i32) {
    %c0_i32 = arith.constant 0 : i32
    %c0_i32_0 = arith.constant 0 : i32
    %c0_i32_1 = arith.constant 0 : i32
    return %c0_i32, %c0_i32_0 : i32, i32
  }
  func.func @transform_2(%arg0: i32) -> (i32, i32) {
    %c0_i32 = arith.constant 0 : i32
    %c0_i32_0 = arith.constant 0 : i32
    %c0_i32_1 = arith.constant 0 : i32
    return %c0_i32, %c0_i32_0 : i32, i32
  }
  func.func @transform_3(%arg0: i32) -> (i32, i32) {
    %c0_i32 = arith.constant 0 : i32
    %c0_i32_0 = arith.constant 0 : i32
    return %arg0, %c0_i32 : i32, i32
  }
}

</mosaic_0001>

<llo_original>
// kernel: tpu_custom_call.1
$region0: #{tpu_custom_call.1}
  #allocation0 [shape = 'u32[]', space=smem, size = 0x4, offset = 0x4, fixed_abs, tag = 'smem constant byte address 0x4 - core index']
  #allocation1 [shape = 'u32[144,128]{1,0:T(1,128)}', space=vmem, size = 0x12000, scoped, tag = 'internal scratch']
  %s0 = inlined_call_operand.hbm [shape: f32[2,1408], index: 0, kind: input, shape index: {}]
  %s1 = inlined_call_operand.hbm [shape: f32[2,1408], index: 1, kind: input, shape index: {}]
  %s2 = inlined_call_operand.vmem [shape: f32[1,2], index: 2, kind: input, shape index: {}]
  %s3 = inlined_call_operand.hbm [shape: f32[2,2], index: 3, kind: output, shape index: {}]
  %s4 = sld [smem:[#allocation0]]
  $region30: #{tpu_custom_call.1} parent=0
    _
  %s6 = ssub.s32 1, %s4
  %s7 = scalar_select 0, %s6, %s4
  $region1: #{tpu_custom_call.1} parent=0
    #allocation2 [shape = 'u8[45056]{0}', space=vmem, size = 0xb000, scoped, tag = 'input window, operand 0, single buffered']
    #allocation3 [shape = 's32[1]{0}', space=sflag, size = 0x4, scoped, tag = 'scoped memory for tpu_custom_call.1']
    #allocation4 [shape = 's32[1]{0}', space=sflag, size = 0x4, scoped, tag = 'scoped memory for tpu_custom_call.1']
    #allocation5 [shape = 'u8[11264]{0}', space=vmem, size = 0x2c00, scoped, tag = 'input window, operand 1, single buffered']
    #allocation6 [shape = 's32[1]{0}', space=sflag, size = 0x4, scoped, tag = 'scoped memory for tpu_custom_call.1']
    #allocation7 [shape = 'u8[4096]{0}', space=vmem, size = 0x1000, scoped, tag = 'output window, operand 0, single buffered']
    %8 = vsyncpa [#allocation3], 0
    %9 = vsyncpa [#allocation6], 0
    %10 = vsyncpa [#allocation4], 0
    // Predicated region
    $region2: #{tpu_custom_call.1} parent=1 // pred_check
      _
    $region3: #{tpu_custom_call.1} parent=1 // pred_check_branch
      %12 = sbr.rel (0) target = $region5
    $region4: #{tpu_custom_call.1} parent=1 // pred_region
      %s14 = ssub.s32 1408, 352
      %15 = vsyncadd [#allocation3], %s14
      %s16 = sshll.u32 [#allocation2], 4
      %s17 = int_to_ptr.vmem [resolvable:$true] %s16
      %22 = dma.hbm_to_vmem [thread:$0]  %s0, 352, %s17, [#allocation3], 352, 352, 22
    $region5: #{tpu_custom_call.1} parent=1 // pred_fallthru
      _
    // Predicated region
    $region6: #{tpu_custom_call.1} parent=1 // pred_check
      _
    $region7: #{tpu_custom_call.1} parent=1 // pred_check_branch
      %24 = sbr.rel (0) target = $region9
    $region8: #{tpu_custom_call.1} parent=1 // pred_region
      %s26 = ssub.s32 352, 352
      %27 = vsyncadd [#allocation6], %s26
      %s29 = sshll.u32 [#allocation5], 4
      %s30 = int_to_ptr.vmem [resolvable:$true] %s29
      %32 = dma.hbm_to_vmem [thread:$0]  %s1, 352, %s30, [#allocation6]
    $region9: #{tpu_custom_call.1} parent=1 // pred_fallthru
      _
    // Predicated region
    $region10: #{tpu_custom_call.1} parent=1 // pred_check
      _
    $region11: #{tpu_custom_call.1} parent=1 // pred_check_branch
      %34 = sbr.rel (0) target = $region13
    $region12: #{tpu_custom_call.1} parent=1 // pred_region
      _
    $region13: #{tpu_custom_call.1} parent=1 // pred_fallthru
      _
    // Predicated region
    $region14: #{tpu_custom_call.1} parent=1 // pred_check
      _
    $region15: #{tpu_custom_call.1} parent=1 // pred_check_branch
      %36 = sbr.rel (0) target = $region17
    $region16: #{tpu_custom_call.1} parent=1 // pred_region
      %37 = dma.done [#allocation3], 1408
    $region17: #{tpu_custom_call.1} parent=1 // pred_fallthru
      _
    // Predicated region
    $region18: #{tpu_custom_call.1} parent=1 // pred_check
      _
    $region19: #{tpu_custom_call.1} parent=1 // pred_check_branch
      %39 = sbr.rel (0) target = $region21
    $region20: #{tpu_custom_call.1} parent=1 // pred_region
      %40 = dma.done [#allocation6], 352
    $region21: #{tpu_custom_call.1} parent=1 // pred_fallthru
      _
    %v41 = vld [vmem:[#allocation2] sm:$0xff]
    %v42 = vld [vmem:[#allocation2 + $0x8] sm:$0xff]
    %v43 = vld [vmem:[#allocation2 + $0x10] sm:$0x3f]
    %v44 = vld [vmem:[#allocation2 + $0x16] sm:$0xff]
    %v45 = vld [vmem:[#allocation2 + $0x1e] sm:$0xff]
    %v46 = vld [vmem:[#allocation2 + $0x26] sm:$0x3f]
    %v47 = vld [vmem:[#allocation2 + $0x2c] sm:$0xff]
    %v48 = vld [vmem:[#allocation2 + $0x34] sm:$0xff]
    %v49 = vld [vmem:[#allocation2 + $0x3c] sm:$0x3f]
    %v50 = vld [vmem:[#allocation2 + $0x42] sm:$0xff]
    %v51 = vld [vmem:[#allocation2 + $0x4a] sm:$0xff]
    %v52 = vld [vmem:[#allocation2 + $0x52] sm:$0x3f]
    %v53 = vld [vmem:[#allocation5] sm:$0xff]
    %v54 = vld [vmem:[#allocation5 + $0x8] sm:$0xff]
    %v55 = vld [vmem:[#allocation5 + $0x10] sm:$0x3f]
    %v56 = vld [vmem:[%s2] sm:$0x1]
    %v58 = vlaneseq
    %v59 = vshrl.u32 %v58, 7
    %v60 = vsub.s32 0, %v59
    %v61 = vrot.slane %v56, %v60
    %v75 = vcombine.low %v41, %v44
    %v76 = vcombine.high %v41, %v44
    %v77 = vcombine.low %v47, %v50
    %v78 = vcombine.high %v47, %v50
    %v80 = vunpack.c.l.s4 1983009808
    %v81 = vunpack.c.0.s8 %v80
    %v82 = vlaneseq
    %v83 = vshrl.u32 %v82, 7
    %v84 = vsub.s32 %v81, %v83
    %v85 = vrot.slane %v75, %v84
    %v87 = vunpack.c.l.s4 1983009808
    %v88 = vunpack.c.0.s8 %v87
    %v89 = vlaneseq
    %v90 = vshrl.u32 %v89, 7
    %v91 = vsub.s32 %v88, %v90
    %v92 = vrot.slane %v76, %v91
    %v94 = vunpack.c.l.s4 1983009808
    %v95 = vunpack.c.0.s8 %v94
    %v96 = vlaneseq
    %v97 = vshrl.u32 %v96, 7
    %v98 = vsub.s32 %v95, %v97
    %v99 = vrot.slane %v77, %v98
    %v101 = vunpack.c.l.s4 1983009808
    %v102 = vunpack.c.0.s8 %v101
    %v103 = vlaneseq
    %v104 = vshrl.u32 %v103, 7
    %v105 = vsub.s32 %v102, %v104
    %v106 = vrot.slane %v78, %v105
    %v107 = vcombine.low %v85, %v99
    %v108 = vcombine.high %v85, %v99
    %v109 = vcombine.low %v92, %v106
    %v110 = vcombine.high %v92, %v106
    %v111 = vcombine.low %v42, %v45
    %v112 = vcombine.high %v42, %v45
    %v113 = vcombine.low %v48, %v51
    %v114 = vcombine.high %v48, %v51
    %v116 = vunpack.c.l.s4 1983009808
    %v117 = vunpack.c.0.s8 %v116
    %v118 = vlaneseq
    %v119 = vshrl.u32 %v118, 7
    %v120 = vsub.s32 %v117, %v119
    %v121 = vrot.slane %v111, %v120
    %v123 = vunpack.c.l.s4 1983009808
    %v124 = vunpack.c.0.s8 %v123
    %v125 = vlaneseq
    %v126 = vshrl.u32 %v125, 7
    %v127 = vsub.s32 %v124, %v126
    %v128 = vrot.slane %v112, %v127
    %v130 = vunpack.c.l.s4 1983009808
    %v131 = vunpack.c.0.s8 %v130
    %v132 = vlaneseq
    %v133 = vshrl.u32 %v132, 7
    %v134 = vsub.s32 %v131, %v133
    %v135 = vrot.slane %v113, %v134
    %v137 = vunpack.c.l.s4 1983009808
    %v138 = vunpack.c.0.s8 %v137
    %v139 = vlaneseq
    %v140 = vshrl.u32 %v139, 7
    %v141 = vsub.s32 %v138, %v140
    %v142 = vrot.slane %v114, %v141
    %v143 = vcombine.low %v121, %v135
    %v144 = vcombine.high %v121, %v135
    %v145 = vcombine.low %v128, %v142
    %v146 = vcombine.high %v128, %v142
    %v147 = vcombine.low %v43, %v46
    %v148 = vcombine.high %v43, %v46
    %v149 = vcombine.low %v49, %v52
    %v150 = vcombine.high %v49, %v52
    %v152 = vunpack.c.l.s4 1983009808
    %v153 = vunpack.c.0.s8 %v152
    %v154 = vlaneseq
    %v155 = vshrl.u32 %v154, 7
    %v156 = vsub.s32 %v153, %v155
    %v157 = vrot.slane %v147, %v156
    %v159 = vunpack.c.l.s4 1983009808
    %v160 = vunpack.c.0.s8 %v159
    %v161 = vlaneseq
    %v162 = vshrl.u32 %v161, 7
    %v163 = vsub.s32 %v160, %v162
    %v164 = vrot.slane %v148, %v163
    %v166 = vunpack.c.l.s4 1983009808
    %v167 = vunpack.c.0.s8 %v166
    %v168 = vlaneseq
    %v169 = vshrl.u32 %v168, 7
    %v170 = vsub.s32 %v167, %v169
    %v171 = vrot.slane %v149, %v170
    %v173 = vunpack.c.l.s4 1983009808
    %v174 = vunpack.c.0.s8 %v173
    %v175 = vlaneseq
    %v176 = vshrl.u32 %v175, 7
    %v177 = vsub.s32 %v174, %v176
    %v178 = vrot.slane %v150, %v177
    %v179 = vcombine.low %v157, %v171
    %v180 = vcombine.high %v157, %v171
    %v181 = vcombine.low %v164, %v178
    %v196 = vcombine.high %v53, %v53
    %v198 = vunpack.c.l.s4 1983009808
    %v199 = vunpack.c.0.s8 %v198
    %v200 = vlaneseq
    %v201 = vshrl.u32 %v200, 7
    %v202 = vsub.s32 %v199, %v201
    %v203 = vrot.slane %v53, %v202
    %v205 = vunpack.c.l.s4 1983009808
    %v206 = vunpack.c.0.s8 %v205
    %v207 = vlaneseq
    %v208 = vshrl.u32 %v207, 7
    %v209 = vsub.s32 %v206, %v208
    %v210 = vrot.slane %v196, %v209
    %v211 = vcombine.high %v203, %v203
    %v212 = vcombine.high %v210, %v210
    %v213 = vcombine.high %v54, %v54
    %v215 = vunpack.c.l.s4 1983009808
    %v216 = vunpack.c.0.s8 %v215
    %v217 = vlaneseq
    %v218 = vshrl.u32 %v217, 7
    %v219 = vsub.s32 %v216, %v218
    %v220 = vrot.slane %v54, %v219
    %v222 = vunpack.c.l.s4 1983009808
    %v223 = vunpack.c.0.s8 %v222
    %v224 = vlaneseq
    %v225 = vshrl.u32 %v224, 7
    %v226 = vsub.s32 %v223, %v225
    %v227 = vrot.slane %v213, %v226
    %v228 = vcombine.high %v220, %v220
    %v229 = vcombine.high %v227, %v227
    %v230 = vcombine.high %v55, %v55
    %v232 = vunpack.c.l.s4 1983009808
    %v233 = vunpack.c.0.s8 %v232
    %v234 = vlaneseq
    %v235 = vshrl.u32 %v234, 7
    %v236 = vsub.s32 %v233, %v235
    %v237 = vrot.slane %v55, %v236
    %v239 = vunpack.c.l.s4 1983009808
    %v240 = vunpack.c.0.s8 %v239
    %v241 = vlaneseq
    %v242 = vshrl.u32 %v241, 7
    %v243 = vsub.s32 %v240, %v242
    %v244 = vrot.slane %v230, %v243
    %v245 = vcombine.high %v237, %v237
    %257 = vmatprep.subr.mxu0 0.0
    %258 = vmatpush1.xpose.msra.mxu0 0.0
    %259 = vmatprep.subr.mxu0 0.0
    %260 = vmatpush1.xpose.msra.mxu0 0.0
    %261 = vmatprep.subr.mxu0 0.0
    %262 = vmatpush1.xpose.msra.mxu0 0.0
    %263 = vmatprep.subr.mxu0 0.0
    %264 = vmatpush1.xpose.msra.mxu0 0.0
    %265 = vmatprep.subr.mxu0 0.0
    %266 = vmatpush1.xpose.msra.mxu0 0.0
    %267 = vmatprep.subr.mxu0 0.0
    %268 = vmatpush1.xpose.msra.mxu0 0.0
    %269 = vmatprep.subr.mxu0 0.0
    %270 = vmatpush1.xpose.msra.mxu0 0.0
    %271 = vmatprep.subr.mxu0 0.0
    %272 = vmatpush1.xpose.msra.mxu0 0.0
    %273 = vmatprep.subr.mxu0 0.0
    %274 = vmatpush1.xpose.msra.mxu0 0.0
    %275 = vmatprep.subr.mxu0 0.0
    %276 = vmatpush1.xpose.msra.mxu0 0.0
    %277 = vmatprep.subr.mxu0 0.0
    %278 = vmatpush1.xpose.msra.mxu0 0.0
    %279 = vmatprep.subr.mxu0 0.0
    %280 = vmatpush1.xpose.msra.mxu0 0.0
    %281 = vmatprep.subr.mxu0 0.0
    %282 = vmatpush1.xpose.msra.mxu0 0.0
    %283 = vmatprep.subr.mxu0 0.0
    %284 = vmatpush1.xpose.msra.mxu0 0.0
    %285 = vmatprep.subr.mxu0 0.0
    %286 = vmatpush1.xpose.msra.mxu0 0.0
    %287 = vmatprep.subr.mxu0 %v211
    %288 = vmatpush1.xpose.msra.mxu0 %v203
    %289 = vmatprep.subr.mxu0 0.0
    %290 = vmatpush2.xpose.msra.mxu0 0.0
    %291 = vmatprep.subr.mxu0 0.0
    %292 = vmatpush2.xpose.msra.mxu0 0.0
    %293 = vmatprep.subr.mxu0 0.0
    %294 = vmatpush2.xpose.msra.mxu0 0.0
    %295 = vmatprep.subr.mxu0 0.0
    %296 = vmatpush2.xpose.msra.mxu0 0.0
    %297 = vmatprep.subr.mxu0 0.0
    %298 = vmatpush2.xpose.msra.mxu0 0.0
    %299 = vmatprep.subr.mxu0 0.0
    %300 = vmatpush2.xpose.msra.mxu0 0.0
    %301 = vmatprep.subr.mxu0 0.0
    %302 = vmatpush2.xpose.msra.mxu0 0.0
    %303 = vmatprep.subr.mxu0 0.0
    %304 = vmatpush2.xpose.msra.mxu0 0.0
    %305 = vmatprep.subr.mxu0 0.0
    %306 = vmatpush2.xpose.msra.mxu0 0.0
    %307 = vmatprep.subr.mxu0 0.0
    %308 = vmatpush2.xpose.msra.mxu0 0.0
    %309 = vmatprep.subr.mxu0 0.0
    %310 = vmatpush2.xpose.msra.mxu0 0.0
    %311 = vmatprep.subr.mxu0 0.0
    %312 = vmatpush2.xpose.msra.mxu0 0.0
    %313 = vmatprep.subr.mxu0 0.0
    %314 = vmatpush2.xpose.msra.mxu0 0.0
    %315 = vmatprep.subr.mxu0 0.0
    %316 = vmatpush2.xpose.msra.mxu0 0.0
    %317 = vmatprep.subr.mxu0 0.0
    %318 = vmatpush2.xpose.msra.mxu0 0.0
    %319 = vmatprep.subr.mxu0 0.0
    %320 = vmatpush2.xpose.msra.mxu0 0.0
    %321 = vmatprep.mubr.f32.mxu0 %v108
    %322 = vmatmul.mubr.f32.gmra.mxu0 %v107
    %v323 = vpop.f32.mrf.mxu0
    %v324 = vadd.f32 %v61, %v323
    %v325 = vpop.f32.mrf.mxu0
    %326 = vdwg.mxu0
    %327 = vmatprep.subr.mxu0 0.0
    %328 = vmatpush1.xpose.msra.mxu0 0.0
    %329 = vmatprep.subr.mxu0 0.0
    %330 = vmatpush1.xpose.msra.mxu0 0.0
    %331 = vmatprep.subr.mxu0 0.0
    %332 = vmatpush1.xpose.msra.mxu0 0.0
    %333 = vmatprep.subr.mxu0 0.0
    %334 = vmatpush1.xpose.msra.mxu0 0.0
    %335 = vmatprep.subr.mxu0 0.0
    %336 = vmatpush1.xpose.msra.mxu0 0.0
    %337 = vmatprep.subr.mxu0 0.0
    %338 = vmatpush1.xpose.msra.mxu0 0.0
    %339 = vmatprep.subr.mxu0 0.0
    %340 = vmatpush1.xpose.msra.mxu0 0.0
    %341 = vmatprep.subr.mxu0 0.0
    %342 = vmatpush1.xpose.msra.mxu0 0.0
    %343 = vmatprep.subr.mxu0 0.0
    %344 = vmatpush1.xpose.msra.mxu0 0.0
    %345 = vmatprep.subr.mxu0 0.0
    %346 = vmatpush1.xpose.msra.mxu0 0.0
    %347 = vmatprep.subr.mxu0 0.0
    %348 = vmatpush1.xpose.msra.mxu0 0.0
    %349 = vmatprep.subr.mxu0 0.0
    %350 = vmatpush1.xpose.msra.mxu0 0.0
    %351 = vmatprep.subr.mxu0 0.0
    %352 = vmatpush1.xpose.msra.mxu0 0.0
    %353 = vmatprep.subr.mxu0 0.0
    %354 = vmatpush1.xpose.msra.mxu0 0.0
    %355 = vmatprep.subr.mxu0 0.0
    %356 = vmatpush1.xpose.msra.mxu0 0.0
    %357 = vmatprep.subr.mxu0 %v212
    %358 = vmatpush1.xpose.msra.mxu0 %v210
    %359 = vmatprep.subr.mxu0 0.0
    %360 = vmatpush2.xpose.msra.mxu0 0.0
    %361 = vmatprep.subr.mxu0 0.0
    %362 = vmatpush2.xpose.msra.mxu0 0.0
    %363 = vmatprep.subr.mxu0 0.0
    %364 = vmatpush2.xpose.msra.mxu0 0.0
    %365 = vmatprep.subr.mxu0 0.0
    %366 = vmatpush2.xpose.msra.mxu0 0.0
    %367 = vmatprep.subr.mxu0 0.0
    %368 = vmatpush2.xpose.msra.mxu0 0.0
    %369 = vmatprep.subr.mxu0 0.0
    %370 = vmatpush2.xpose.msra.mxu0 0.0
    %371 = vmatprep.subr.mxu0 0.0
    %372 = vmatpush2.xpose.msra.mxu0 0.0
    %373 = vmatprep.subr.mxu0 0.0
    %374 = vmatpush2.xpose.msra.mxu0 0.0
    %375 = vmatprep.subr.mxu0 0.0
    %376 = vmatpush2.xpose.msra.mxu0 0.0
    %377 = vmatprep.subr.mxu0 0.0
    %378 = vmatpush2.xpose.msra.mxu0 0.0
    %379 = vmatprep.subr.mxu0 0.0
    %380 = vmatpush2.xpose.msra.mxu0 0.0
    %381 = vmatprep.subr.mxu0 0.0
    %382 = vmatpush2.xpose.msra.mxu0 0.0
    %383 = vmatprep.subr.mxu0 0.0
    %384 = vmatpush2.xpose.msra.mxu0 0.0
    %385 = vmatprep.subr.mxu0 0.0
    %386 = vmatpush2.xpose.msra.mxu0 0.0
    %387 = vmatprep.subr.mxu0 0.0
    %388 = vmatpush2.xpose.msra.mxu0 0.0
    %389 = vmatprep.subr.mxu0 0.0
    %390 = vmatpush2.xpose.msra.mxu0 0.0
    %391 = vmatprep.mubr.f32.mxu0 %v110
    %392 = vmatmul.mubr.f32.gmra.mxu0 %v109
    %v393 = vpop.f32.mrf.mxu0
    %v394 = vadd.f32 %v324, %v393
    %v395 = vpop.f32.mrf.mxu0
    %396 = vdwg.mxu0
    %397 = vmatprep.subr.mxu0 0.0
    %398 = vmatpush1.xpose.msra.mxu0 0.0
    %399 = vmatprep.subr.mxu0 0.0
    %400 = vmatpush1.xpose.msra.mxu0 0.0
    %401 = vmatprep.subr.mxu0 0.0
    %402 = vmatpush1.xpose.msra.mxu0 0.0
    %403 = vmatprep.subr.mxu0 0.0
    %404 = vmatpush1.xpose.msra.mxu0 0.0
    %405 = vmatprep.subr.mxu0 0.0
    %406 = vmatpush1.xpose.msra.mxu0 0.0
    %407 = vmatprep.subr.mxu0 0.0
    %408 = vmatpush1.xpose.msra.mxu0 0.0
    %409 = vmatprep.subr.mxu0 0.0
    %410 = vmatpush1.xpose.msra.mxu0 0.0
    %411 = vmatprep.subr.mxu0 0.0
    %412 = vmatpush1.xpose.msra.mxu0 0.0
    %413 = vmatprep.subr.mxu0 0.0
    %414 = vmatpush1.xpose.msra.mxu0 0.0
    %415 = vmatprep.subr.mxu0 0.0
    %416 = vmatpush1.xpose.msra.mxu0 0.0
    %417 = vmatprep.subr.mxu0 0.0
    %418 = vmatpush1.xpose.msra.mxu0 0.0
    %419 = vmatprep.subr.mxu0 0.0
    %420 = vmatpush1.xpose.msra.mxu0 0.0
    %421 = vmatprep.subr.mxu0 0.0
    %422 = vmatpush1.xpose.msra.mxu0 0.0
    %423 = vmatprep.subr.mxu0 0.0
    %424 = vmatpush1.xpose.msra.mxu0 0.0
    %425 = vmatprep.subr.mxu0 0.0
    %426 = vmatpush1.xpose.msra.mxu0 0.0
    %427 = vmatprep.subr.mxu0 %v228
    %428 = vmatpush1.xpose.msra.mxu0 %v220
    %429 = vmatprep.subr.mxu0 0.0
    %430 = vmatpush2.xpose.msra.mxu0 0.0
    %431 = vmatprep.subr.mxu0 0.0
    %432 = vmatpush2.xpose.msra.mxu0 0.0
    %433 = vmatprep.subr.mxu0 0.0
    %434 = vmatpush2.xpose.msra.mxu0 0.0
    %435 = vmatprep.subr.mxu0 0.0
    %436 = vmatpush2.xpose.msra.mxu0 0.0
    %437 = vmatprep.subr.mxu0 0.0
    %438 = vmatpush2.xpose.msra.mxu0 0.0
    %439 = vmatprep.subr.mxu0 0.0
    %440 = vmatpush2.xpose.msra.mxu0 0.0
    %441 = vmatprep.subr.mxu0 0.0
    %442 = vmatpush2.xpose.msra.mxu0 0.0
    %443 = vmatprep.subr.mxu0 0.0
    %444 = vmatpush2.xpose.msra.mxu0 0.0
    %445 = vmatprep.subr.mxu0 0.0
    %446 = vmatpush2.xpose.msra.mxu0 0.0
    %447 = vmatprep.subr.mxu0 0.0
    %448 = vmatpush2.xpose.msra.mxu0 0.0
    %449 = vmatprep.subr.mxu0 0.0
    %450 = vmatpush2.xpose.msra.mxu0 0.0
    %451 = vmatprep.subr.mxu0 0.0
    %452 = vmatpush2.xpose.msra.mxu0 0.0
    %453 = vmatprep.subr.mxu0 0.0
    %454 = vmatpush2.xpose.msra.mxu0 0.0
    %455 = vmatprep.subr.mxu0 0.0
    %456 = vmatpush2.xpose.msra.mxu0 0.0
    %457 = vmatprep.subr.mxu0 0.0
    %458 = vmatpush2.xpose.msra.mxu0 0.0
    %459 = vmatprep.subr.mxu0 0.0
    %460 = vmatpush2.xpose.msra.mxu0 0.0
    %461 = vmatprep.mubr.f32.mxu0 %v144
    %462 = vmatmul.mubr.f32.gmra.mxu0 %v143
    %v463 = vpop.f32.mrf.mxu0
    %v464 = vadd.f32 %v394, %v463
    %v465 = vpop.f32.mrf.mxu0
    %466 = vdwg.mxu0
    %467 = vmatprep.subr.mxu0 0.0
    %468 = vmatpush1.xpose.msra.mxu0 0.0
    %469 = vmatprep.subr.mxu0 0.0
    %470 = vmatpush1.xpose.msra.mxu0 0.0
    %471 = vmatprep.subr.mxu0 0.0
    %472 = vmatpush1.xpose.msra.mxu0 0.0
    %473 = vmatprep.subr.mxu0 0.0
    %474 = vmatpush1.xpose.msra.mxu0 0.0
    %475 = vmatprep.subr.mxu0 0.0
    %476 = vmatpush1.xpose.msra.mxu0 0.0
    %477 = vmatprep.subr.mxu0 0.0
    %478 = vmatpush1.xpose.msra.mxu0 0.0
    %479 = vmatprep.subr.mxu0 0.0
    %480 = vmatpush1.xpose.msra.mxu0 0.0
    %481 = vmatprep.subr.mxu0 0.0
    %482 = vmatpush1.xpose.msra.mxu0 0.0
    %483 = vmatprep.subr.mxu0 0.0
    %484 = vmatpush1.xpose.msra.mxu0 0.0
    %485 = vmatprep.subr.mxu0 0.0
    %486 = vmatpush1.xpose.msra.mxu0 0.0
    %487 = vmatprep.subr.mxu0 0.0
    %488 = vmatpush1.xpose.msra.mxu0 0.0
    %489 = vmatprep.subr.mxu0 0.0
    %490 = vmatpush1.xpose.msra.mxu0 0.0
    %491 = vmatprep.subr.mxu0 0.0
    %492 = vmatpush1.xpose.msra.mxu0 0.0
    %493 = vmatprep.subr.mxu0 0.0
    %494 = vmatpush1.xpose.msra.mxu0 0.0
    %495 = vmatprep.subr.mxu0 0.0
    %496 = vmatpush1.xpose.msra.mxu0 0.0
    %497 = vmatprep.subr.mxu0 %v229
    %498 = vmatpush1.xpose.msra.mxu0 %v227
    %499 = vmatprep.subr.mxu0 0.0
    %500 = vmatpush2.xpose.msra.mxu0 0.0
    %501 = vmatprep.subr.mxu0 0.0
    %502 = vmatpush2.xpose.msra.mxu0 0.0
    %503 = vmatprep.subr.mxu0 0.0
    %504 = vmatpush2.xpose.msra.mxu0 0.0
    %505 = vmatprep.subr.mxu0 0.0
    %506 = vmatpush2.xpose.msra.mxu0 0.0
    %507 = vmatprep.subr.mxu0 0.0
    %508 = vmatpush2.xpose.msra.mxu0 0.0
    %509 = vmatprep.subr.mxu0 0.0
    %510 = vmatpush2.xpose.msra.mxu0 0.0
    %511 = vmatprep.subr.mxu0 0.0
    %512 = vmatpush2.xpose.msra.mxu0 0.0
    %513 = vmatprep.subr.mxu0 0.0
    %514 = vmatpush2.xpose.msra.mxu0 0.0
    %515 = vmatprep.subr.mxu0 0.0
    %516 = vmatpush2.xpose.msra.mxu0 0.0
    %517 = vmatprep.subr.mxu0 0.0
    %518 = vmatpush2.xpose.msra.mxu0 0.0
    %519 = vmatprep.subr.mxu0 0.0
    %520 = vmatpush2.xpose.msra.mxu0 0.0
    %521 = vmatprep.subr.mxu0 0.0
    %522 = vmatpush2.xpose.msra.mxu0 0.0
    %523 = vmatprep.subr.mxu0 0.0
    %524 = vmatpush2.xpose.msra.mxu0 0.0
    %525 = vmatprep.subr.mxu0 0.0
    %526 = vmatpush2.xpose.msra.mxu0 0.0
    %527 = vmatprep.subr.mxu0 0.0
    %528 = vmatpush2.xpose.msra.mxu0 0.0
    %529 = vmatprep.subr.mxu0 0.0
    %530 = vmatpush2.xpose.msra.mxu0 0.0
    %531 = vmatprep.mubr.f32.mxu0 %v146
    %532 = vmatmul.mubr.f32.gmra.mxu0 %v145
    %v533 = vpop.f32.mrf.mxu0
    %v534 = vadd.f32 %v464, %v533
    %v535 = vpop.f32.mrf.mxu0
    %536 = vdwg.mxu0
    %537 = vmatprep.subr.mxu0 0.0
    %538 = vmatpush1.xpose.msra.mxu0 0.0
    %539 = vmatprep.subr.mxu0 0.0
    %540 = vmatpush1.xpose.msra.mxu0 0.0
    %541 = vmatprep.subr.mxu0 0.0
    %542 = vmatpush1.xpose.msra.mxu0 0.0
    %543 = vmatprep.subr.mxu0 0.0
    %544 = vmatpush1.xpose.msra.mxu0 0.0
    %545 = vmatprep.subr.mxu0 0.0
    %546 = vmatpush1.xpose.msra.mxu0 0.0
    %547 = vmatprep.subr.mxu0 0.0
    %548 = vmatpush1.xpose.msra.mxu0 0.0
    %549 = vmatprep.subr.mxu0 0.0
    %550 = vmatpush1.xpose.msra.mxu0 0.0
    %551 = vmatprep.subr.mxu0 0.0
    %552 = vmatpush1.xpose.msra.mxu0 0.0
    %553 = vmatprep.subr.mxu0 0.0
    %554 = vmatpush1.xpose.msra.mxu0 0.0
    %555 = vmatprep.subr.mxu0 0.0
    %556 = vmatpush1.xpose.msra.mxu0 0.0
    %557 = vmatprep.subr.mxu0 0.0
    %558 = vmatpush1.xpose.msra.mxu0 0.0
    %559 = vmatprep.subr.mxu0 0.0
    %560 = vmatpush1.xpose.msra.mxu0 0.0
    %561 = vmatprep.subr.mxu0 0.0
    %562 = vmatpush1.xpose.msra.mxu0 0.0
    %563 = vmatprep.subr.mxu0 0.0
    %564 = vmatpush1.xpose.msra.mxu0 0.0
    %565 = vmatprep.subr.mxu0 0.0
    %566 = vmatpush1.xpose.msra.mxu0 0.0
    %567 = vmatprep.subr.mxu0 %v245
    %568 = vmatpush1.xpose.msra.mxu0 %v237
    %569 = vmatprep.subr.mxu0 0.0
    %570 = vmatpush2.xpose.msra.mxu0 0.0
    %571 = vmatprep.subr.mxu0 0.0
    %572 = vmatpush2.xpose.msra.mxu0 0.0
    %573 = vmatprep.subr.mxu0 0.0
    %574 = vmatpush2.xpose.msra.mxu0 0.0
    %575 = vmatprep.subr.mxu0 0.0
    %576 = vmatpush2.xpose.msra.mxu0 0.0
    %577 = vmatprep.subr.mxu0 0.0
    %578 = vmatpush2.xpose.msra.mxu0 0.0
    %579 = vmatprep.subr.mxu0 0.0
    %580 = vmatpush2.xpose.msra.mxu0 0.0
    %581 = vmatprep.subr.mxu0 0.0
    %582 = vmatpush2.xpose.msra.mxu0 0.0
    %583 = vmatprep.subr.mxu0 0.0
    %584 = vmatpush2.xpose.msra.mxu0 0.0
    %585 = vmatprep.subr.mxu0 0.0
    %586 = vmatpush2.xpose.msra.mxu0 0.0
    %587 = vmatprep.subr.mxu0 0.0
    %588 = vmatpush2.xpose.msra.mxu0 0.0
    %589 = vmatprep.subr.mxu0 0.0
    %590 = vmatpush2.xpose.msra.mxu0 0.0
    %591 = vmatprep.subr.mxu0 0.0
    %592 = vmatpush2.xpose.msra.mxu0 0.0
    %593 = vmatprep.subr.mxu0 0.0
    %594 = vmatpush2.xpose.msra.mxu0 0.0
    %595 = vmatprep.subr.mxu0 0.0
    %596 = vmatpush2.xpose.msra.mxu0 0.0
    %597 = vmatprep.subr.mxu0 0.0
    %598 = vmatpush2.xpose.msra.mxu0 0.0
    %599 = vmatprep.subr.mxu0 0.0
    %600 = vmatpush2.xpose.msra.mxu0 0.0
    %601 = vmatprep.mubr.f32.mxu0 %v180
    %602 = vmatmul.mubr.f32.gmra.mxu0 %v179
    %v603 = vpop.f32.mrf.mxu0
    %v604 = vadd.f32 %v534, %v603
    %v605 = vpop.f32.mrf.mxu0
    %606 = vdwg.mxu0
    %607 = vmatprep.subr.mxu0 0.0
    %608 = vmatpush1.xpose.msra.mxu0 0.0
    %609 = vmatprep.subr.mxu0 0.0
    %610 = vmatpush1.xpose.msra.mxu0 0.0
    %611 = vmatprep.subr.mxu0 0.0
    %612 = vmatpush1.xpose.msra.mxu0 0.0
    %613 = vmatprep.subr.mxu0 0.0
    %614 = vmatpush1.xpose.msra.mxu0 0.0
    %615 = vmatprep.subr.mxu0 0.0
    %616 = vmatpush1.xpose.msra.mxu0 0.0
    %617 = vmatprep.subr.mxu0 0.0
    %618 = vmatpush1.xpose.msra.mxu0 0.0
    %619 = vmatprep.subr.mxu0 0.0
    %620 = vmatpush1.xpose.msra.mxu0 0.0
    %621 = vmatprep.subr.mxu0 0.0
    %622 = vmatpush1.xpose.msra.mxu0 0.0
    %623 = vmatprep.subr.mxu0 0.0
    %624 = vmatpush1.xpose.msra.mxu0 0.0
    %625 = vmatprep.subr.mxu0 0.0
    %626 = vmatpush1.xpose.msra.mxu0 0.0
    %627 = vmatprep.subr.mxu0 0.0
    %628 = vmatpush1.xpose.msra.mxu0 0.0
    %629 = vmatprep.subr.mxu0 0.0
    %630 = vmatpush1.xpose.msra.mxu0 0.0
    %631 = vmatprep.subr.mxu0 0.0
    %632 = vmatpush1.xpose.msra.mxu0 0.0
    %633 = vmatprep.subr.mxu0 0.0
    %634 = vmatpush1.xpose.msra.mxu0 0.0
    %635 = vmatprep.subr.mxu0 0.0
    %636 = vmatpush1.xpose.msra.mxu0 0.0
    %637 = vmatprep.subr.mxu0 0.0
    %638 = vmatpush1.xpose.msra.mxu0 %v244
    %639 = vmatprep.subr.mxu0 0.0
    %640 = vmatpush2.xpose.msra.mxu0 0.0
    %641 = vmatprep.subr.mxu0 0.0
    %642 = vmatpush2.xpose.msra.mxu0 0.0
    %643 = vmatprep.subr.mxu0 0.0
    %644 = vmatpush2.xpose.msra.mxu0 0.0
    %645 = vmatprep.subr.mxu0 0.0
    %646 = vmatpush2.xpose.msra.mxu0 0.0
    %647 = vmatprep.subr.mxu0 0.0
    %648 = vmatpush2.xpose.msra.mxu0 0.0
    %649 = vmatprep.subr.mxu0 0.0
    %650 = vmatpush2.xpose.msra.mxu0 0.0
    %651 = vmatprep.subr.mxu0 0.0
    %652 = vmatpush2.xpose.msra.mxu0 0.0
    %653 = vmatprep.subr.mxu0 0.0
    %654 = vmatpush2.xpose.msra.mxu0 0.0
    %655 = vmatprep.subr.mxu0 0.0
    %656 = vmatpush2.xpose.msra.mxu0 0.0
    %657 = vmatprep.subr.mxu0 0.0
    %658 = vmatpush2.xpose.msra.mxu0 0.0
    %659 = vmatprep.subr.mxu0 0.0
    %660 = vmatpush2.xpose.msra.mxu0 0.0
    %661 = vmatprep.subr.mxu0 0.0
    %662 = vmatpush2.xpose.msra.mxu0 0.0
    %663 = vmatprep.subr.mxu0 0.0
    %664 = vmatpush2.xpose.msra.mxu0 0.0
    %665 = vmatprep.subr.mxu0 0.0
    %666 = vmatpush2.xpose.msra.mxu0 0.0
    %667 = vmatprep.subr.mxu0 0.0
    %668 = vmatpush2.xpose.msra.mxu0 0.0
    %669 = vmatprep.subr.mxu0 0.0
    %670 = vmatpush2.xpose.msra.mxu0 0.0
    %671 = vmatprep.mubr.f32.mxu0 0.0
    %672 = vmatmul.mubr.f32.gmra.mxu0 %v181
    %v673 = vpop.f32.mrf.mxu0
    %v674 = vadd.f32 %v604, %v673
    %v675 = vpop.f32.mrf.mxu0
    %676 = vdwg.mxu0
    %vm677 = vcmask 15360
    %678 = vst.msk [vmem:[#allocation7] sm:$0xff] %vm677, %v674
    // Predicated region
    $region22: #{tpu_custom_call.1} parent=1 // pred_check
      _
    $region23: #{tpu_custom_call.1} parent=1 // pred_check_branch
      %680 = sbr.rel (0) target = $region25
    $region24: #{tpu_custom_call.1} parent=1 // pred_region
      %s682 = ssub.s32 128, 32
      %683 = vsyncadd [#allocation4], %s682
      %s684 = sshll.u32 [#allocation7], 4
      %s685 = int_to_ptr.vmem [resolvable:$true] %s684
      %690 = dma.vmem_to_hbm [thread:$0]  %s685, 32, %s3, [#allocation4], 32, 32, 2
    $region25: #{tpu_custom_call.1} parent=1 // pred_fallthru
      _
    // Predicated region
    $region26: #{tpu_custom_call.1} parent=1 // pred_check
      _
    $region27: #{tpu_custom_call.1} parent=1 // pred_check_branch
      %692 = sbr.rel (0) target = $region29
    $region28: #{tpu_custom_call.1} parent=1 // pred_region
      %693 = dma.done [#allocation4], 128
    $region29: #{tpu_custom_call.1} parent=1 // pred_fallthru
      _
    %694 = vsyncpa [#allocation3], 1
    %695 = vsyncpa [#allocation6], 1
    %696 = vsyncpa [#allocation4], 1

</llo_original>
